<compile_context>
chip_gen: v7x
topology: tpu7x:2x2x1
jax: 0.10.0
libtpu: 0.0.40
codegen_flags: <defaults>
</compile_context>

<pallas_src>
import jax
import jax.numpy as jnp
from jax.experimental import pallas as pl
from jax.experimental.pallas import tpu as pltpu

OUT_PAD = 128  # packed lane-dense output width: [actor logits | critic | zeros]


def a2c_kernel(x_ref,
               w1_ref, b1_ref, w2_ref, b2_ref,
               wh1_ref, bh1_ref, wh2_ref, bh2_ref,
               out_ref):
    # ----- shared trunk: Linear(F_pad->64) -> ReLU -> Linear(64->128) -----
    x = x_ref[...]                                                      # bf16 (tb, F_pad)
    h1 = jnp.dot(x, w1_ref[...], preferred_element_type=jnp.float32) + b1_ref[...]
    h1 = jnp.maximum(h1, 0.0).astype(jnp.bfloat16)
    feat = (jnp.dot(h1, w2_ref[...], preferred_element_type=jnp.float32)
            + b2_ref[...]).astype(jnp.bfloat16)                         # (tb, 128)

    # ----- fused heads, layer 1: (128 -> 1024) == [actor 512 | critic 512] -----
    hh = jnp.dot(feat, wh1_ref[...], preferred_element_type=jnp.float32) + bh1_ref[...]
    hh = jnp.maximum(hh, 0.0).astype(jnp.bfloat16)                      # (tb, 1024)

    # ----- fused heads, layer 2: block-diagonal (1024 -> 128 packed lanes) -----
    out = jnp.dot(hh, wh2_ref[...], preferred_element_type=jnp.float32) + bh2_ref[...]
    out_ref[...] = out.astype(out_ref.dtype)                            # (tb, 128)


def pack_params(params, n_actions, f_pad):
    """Fuse head weights, zero-pad trunk input dim, cast weights to bf16."""
    (w1, b1, w2, b2, wa1, ba1, wa2, ba2, wc1, bc1, wc2, bc2) = params
    F = w1.shape[0]
    H = wa1.shape[1]  # 512
    assert n_actions + 1 <= OUT_PAD, "packed output assumes n_actions + 1 <= 128"

    # pad trunk input rows (matches zero-padded x lanes)
    w1p = jnp.zeros((f_pad, w1.shape[1]), jnp.float32).at[:F].set(w1)

    # head layer 1: concatenate along the output dim -> one wide matmul
    wh1 = jnp.concatenate([wa1, wc1], axis=1)           # (128, 1024)
    bh1 = jnp.concatenate([ba1, bc1], axis=1)           # (1, 1024)

    # head layer 2: block-diagonal, lane-dense packed output
    wh2 = jnp.zeros((2 * H, OUT_PAD), jnp.float32)
    wh2 = wh2.at[:H, :n_actions].set(wa2)               # actor 512 -> lanes [0, n_actions)
    wh2 = wh2.at[H:, n_actions:n_actions + 1].set(wc2)  # critic 512 -> lane n_actions
    bh2 = jnp.zeros((1, OUT_PAD), jnp.float32)
    bh2 = bh2.at[:, :n_actions].set(ba2)
    bh2 = bh2.at[:, n_actions:n_actions + 1].set(bc2)

    bf = lambda w: w.astype(jnp.bfloat16)
    return (bf(w1p), b1, bf(w2), b2, bf(wh1), bh1, bf(wh2), bh2)


def a2c_forward(x, params, n_actions, *, batch_tile=512):
    """x: (B, D0, D1). Returns (actor_logits (B, n_actions), critic_value (B, 1))."""
    B, D0, D1 = x.shape
    F = D0 * D1
    f_pad = ((F + 127) // 128) * 128

    # lane-dense, zero-padded, bf16 input slab
    x_flat = jnp.zeros((B, f_pad), jnp.bfloat16).at[:, :F].set(
        x.reshape(B, F).astype(jnp.bfloat16))

    packed = pack_params(params, n_actions, f_pad)

    tb = min(batch_tile, B)
    # For large batches ensure >= 2 grid steps so the "parallel" axis can be
    # sharded across v7x's two TensorCores (harmless on v5e/v6e).
    if B >= 256 and pl.cdiv(B, tb) < 2:
        tb = ((B + 1) // 2 + 7) // 8 * 8
    grid = (pl.cdiv(B, tb),)

    # Full-array (replicated) block for every parameter; index_map returns block
    # indices (all zeros) so the same VMEM-resident copy is reused each step.
    # NOTE: params never change across grid steps; VMEM is <1 MiB total so the
    # default double-buffering is left in place (pl.Buffered(1) would also work).
    def full_spec(arr):
        return pl.BlockSpec(arr.shape, lambda i: (0,) * arr.ndim)

    in_specs = [pl.BlockSpec((tb, f_pad), lambda i: (i, 0))] + [
        full_spec(p) for p in packed
    ]
    out_specs = pl.BlockSpec((tb, OUT_PAD), lambda i: (i, 0))

    # If B is not a multiple of tb, the last block's padded rows compute garbage
    # but their output writes are masked by Pallas, so results stay correct.
    out = pl.pallas_call(
        a2c_kernel,
        out_shape=jax.ShapeDtypeStruct((B, OUT_PAD), jnp.float32),
        grid_spec=pltpu.PrefetchScalarGridSpec(
            num_scalar_prefetch=0,
            grid=grid,
            in_specs=in_specs,
            out_specs=out_specs,
        ),
        compiler_params=pltpu.CompilerParams(
            dimension_semantics=("parallel",)),
    )(x_flat, *packed)

    actor = out[:, :n_actions]
    critic = out[:, n_actions:n_actions + 1]
    return actor, critic


def init_params(key, in_features, n_actions):
    """Deterministic init. Weights stored as (in, out); bias as (1, out)."""
    dims = [
        (in_features, 64),   # net.0
        (64, 128),           # net.2
        (128, 512),          # actor.0
        (512, n_actions),    # actor.2
        (128, 512),          # critic.0
        (512, 1),            # critic.2
    ]
    params = []
    for fan_in, fan_out in dims:
        kw, kb, key = jax.random.split(key, 3)
        bound = 1.0 / (fan_in ** 0.5)
        w = jax.random.uniform(kw, (fan_in, fan_out), jnp.float32, -bound, bound)
        b = jax.random.uniform(kb, (1, fan_out), jnp.float32, -bound, bound)
        params += [w, b]
    return tuple(params)


def reference_forward(x, params):
    """Pure-JAX reference emulating the kernel's bf16 rounding (f32 accumulation)."""
    (w1, b1, w2, b2, wa1, ba1, wa2, ba2, wc1, bc1, wc2, bc2) = params
    B = x.shape[0]
    bf = lambda a: a.astype(jnp.bfloat16).astype(jnp.float32)
    xf = bf(x.reshape(B, -1))
    h1 = jnp.maximum(xf @ bf(w1) + b1, 0.0)
    feat = bf(h1) @ bf(w2) + b2
    ha = jnp.maximum(bf(feat) @ bf(wa1) + ba1, 0.0)
    actor = bf(ha) @ bf(wa2) + ba2
    hc = jnp.maximum(bf(feat) @ bf(wc1) + bc1, 0.0)
    critic = bf(hc) @ bf(wc2) + bc2
    return actor, critic


if __name__ == "__main__":
    key = jax.random.PRNGKey(0)
    kx, kp = jax.random.split(key)

    # input_shape = (4, 16) -> flattened feature dim 64; n_actions = 6; batch = 8
    B, D0, D1 = 8, 4, 16
    n_actions = 6

    x = jax.random.normal(kx, (B, D0, D1), jnp.float32)
    params = init_params(kp, D0 * D1, n_actions)

    actor, critic = a2c_forward(x, params, n_actions)
    actor, critic = jax.block_until_ready((actor, critic))

    actor_ref, critic_ref = reference_forward(x, params)
    assert actor.shape == (B, n_actions) and critic.shape == (B, 1)
    assert jnp.allclose(actor, actor_ref, atol=5e-3, rtol=5e-3)
    assert jnp.allclose(critic, critic_ref, atol=5e-3, rtol=5e-3)

    print("KERNEL_OK")
</pallas_src>

<mosaic_0001>
module attributes {stable_mosaic.version = 11 : i64} {
  func.func @a2c_kernel(%arg0: i32, %arg1: memref<8x128xbf16, #tpu.memory_space<vmem>>, %arg2: memref<128x64xbf16, #tpu.memory_space<vmem>>, %arg3: memref<1x64xf32, #tpu.memory_space<vmem>>, %arg4: memref<64x128xbf16, #tpu.memory_space<vmem>>, %arg5: memref<1x128xf32, #tpu.memory_space<vmem>>, %arg6: memref<128x1024xbf16, #tpu.memory_space<vmem>>, %arg7: memref<1x1024xf32, #tpu.memory_space<vmem>>, %arg8: memref<1024x128xbf16, #tpu.memory_space<vmem>>, %arg9: memref<1x128xf32, #tpu.memory_space<vmem>>, %arg10: memref<8x128xf32, #tpu.memory_space<vmem>>) attributes {dimension_semantics = [#tpu.dimension_semantics<parallel>], iteration_bounds = array<i64: 1>, scalar_prefetch = 0 : i64, scratch_operands = 0 : i64, tpu.core_type = #tpu.core_type<tc>, window_params = [{transform_indices = @transform_0, window_bounds = array<i64: 8, 128>}, {pipeline_mode = #tpu.pipeline_mode<synchronous>, transform_indices = @transform_1, window_bounds = array<i64: 128, 64>}, {pipeline_mode = #tpu.pipeline_mode<synchronous>, transform_indices = @transform_2, window_bounds = array<i64: 1, 64>}, {pipeline_mode = #tpu.pipeline_mode<synchronous>, transform_indices = @transform_3, window_bounds = array<i64: 64, 128>}, {pipeline_mode = #tpu.pipeline_mode<synchronous>, transform_indices = @transform_4, window_bounds = array<i64: 1, 128>}, {pipeline_mode = #tpu.pipeline_mode<synchronous>, transform_indices = @transform_5, window_bounds = array<i64: 128, 1024>}, {pipeline_mode = #tpu.pipeline_mode<synchronous>, transform_indices = @transform_6, window_bounds = array<i64: 1, 1024>}, {pipeline_mode = #tpu.pipeline_mode<synchronous>, transform_indices = @transform_7, window_bounds = array<i64: 1024, 128>}, {pipeline_mode = #tpu.pipeline_mode<synchronous>, transform_indices = @transform_8, window_bounds = array<i64: 1, 128>}, {transform_indices = @transform_9, window_bounds = array<i64: 8, 128>}]} {
    %c0 = arith.constant 0 : index
    %c0_0 = arith.constant 0 : index
    %0 = vector.load %arg1[%c0, %c0_0] : memref<8x128xbf16, #tpu.memory_space<vmem>>, vector<8x128xbf16>
    %c0_1 = arith.constant 0 : index
    %c0_2 = arith.constant 0 : index
    %1 = vector.load %arg2[%c0_1, %c0_2] : memref<128x64xbf16, #tpu.memory_space<vmem>>, vector<128x64xbf16>
    %cst = arith.constant dense<0.000000e+00> : vector<8x64xf32>
    %2 = tpu.matmul %0, %1, %cst {dimension_numbers = #tpu.dot_dimension_numbers<[1], [0], [0], [1], [0, 0, 1, 1], [], []>} : vector<8x128xbf16>, vector<128x64xbf16>, vector<8x64xf32> -> vector<8x64xf32>
    %c0_3 = arith.constant 0 : index
    %c0_4 = arith.constant 0 : index
    %3 = vector.load %arg3[%c0_3, %c0_4] : memref<1x64xf32, #tpu.memory_space<vmem>>, vector<1x64xf32>
    %4 = vector.broadcast %3 : vector<1x64xf32> to vector<8x64xf32>
    %5 = arith.addf %2, %4 : vector<8x64xf32>
    %cst_5 = arith.constant 0.000000e+00 : f32
    %6 = vector.broadcast %cst_5 : f32 to vector<8x64xf32>
    %7 = arith.maximumf %5, %6 : vector<8x64xf32>
    %8 = arith.truncf %7 : vector<8x64xf32> to vector<8x64xbf16>
    %c0_6 = arith.constant 0 : index
    %c0_7 = arith.constant 0 : index
    %9 = vector.load %arg4[%c0_6, %c0_7] : memref<64x128xbf16, #tpu.memory_space<vmem>>, vector<64x128xbf16>
    %cst_8 = arith.constant dense<0.000000e+00> : vector<8x128xf32>
    %10 = tpu.matmul %8, %9, %cst_8 {dimension_numbers = #tpu.dot_dimension_numbers<[1], [0], [0], [1], [0, 0, 1, 1], [], []>} : vector<8x64xbf16>, vector<64x128xbf16>, vector<8x128xf32> -> vector<8x128xf32>
    %c0_9 = arith.constant 0 : index
    %c0_10 = arith.constant 0 : index
    %11 = vector.load %arg5[%c0_9, %c0_10] : memref<1x128xf32, #tpu.memory_space<vmem>>, vector<1x128xf32>
    %12 = vector.broadcast %11 : vector<1x128xf32> to vector<8x128xf32>
    %13 = arith.addf %10, %12 : vector<8x128xf32>
    %14 = arith.truncf %13 : vector<8x128xf32> to vector<8x128xbf16>
    %c0_11 = arith.constant 0 : index
    %c0_12 = arith.constant 0 : index
    %15 = vector.load %arg6[%c0_11, %c0_12] : memref<128x1024xbf16, #tpu.memory_space<vmem>>, vector<128x1024xbf16>
    %cst_13 = arith.constant dense<0.000000e+00> : vector<8x1024xf32>
    %16 = tpu.matmul %14, %15, %cst_13 {dimension_numbers = #tpu.dot_dimension_numbers<[1], [0], [0], [1], [0, 0, 1, 1], [], []>} : vector<8x128xbf16>, vector<128x1024xbf16>, vector<8x1024xf32> -> vector<8x1024xf32>
    %c0_14 = arith.constant 0 : index
    %c0_15 = arith.constant 0 : index
    %17 = vector.load %arg7[%c0_14, %c0_15] : memref<1x1024xf32, #tpu.memory_space<vmem>>, vector<1x1024xf32>
    %18 = vector.broadcast %17 : vector<1x1024xf32> to vector<8x1024xf32>
    %19 = arith.addf %16, %18 : vector<8x1024xf32>
    %cst_16 = arith.constant 0.000000e+00 : f32
    %20 = vector.broadcast %cst_16 : f32 to vector<8x1024xf32>
    %21 = arith.maximumf %19, %20 : vector<8x1024xf32>
    %22 = arith.truncf %21 : vector<8x1024xf32> to vector<8x1024xbf16>
    %c0_17 = arith.constant 0 : index
    %c0_18 = arith.constant 0 : index
    %23 = vector.load %arg8[%c0_17, %c0_18] : memref<1024x128xbf16, #tpu.memory_space<vmem>>, vector<1024x128xbf16>
    %cst_19 = arith.constant dense<0.000000e+00> : vector<8x128xf32>
    %24 = tpu.matmul %22, %23, %cst_19 {dimension_numbers = #tpu.dot_dimension_numbers<[1], [0], [0], [1], [0, 0, 1, 1], [], []>} : vector<8x1024xbf16>, vector<1024x128xbf16>, vector<8x128xf32> -> vector<8x128xf32>
    %c0_20 = arith.constant 0 : index
    %c0_21 = arith.constant 0 : index
    %25 = vector.load %arg9[%c0_20, %c0_21] : memref<1x128xf32, #tpu.memory_space<vmem>>, vector<1x128xf32>
    %26 = vector.broadcast %25 : vector<1x128xf32> to vector<8x128xf32>
    %27 = arith.addf %24, %26 : vector<8x128xf32>
    %c0_22 = arith.constant 0 : index
    %c0_23 = arith.constant 0 : index
    %28 = vector.load %arg10[%c0_22, %c0_23] : memref<8x128xf32, #tpu.memory_space<vmem>>, vector<8x128xf32>
    tpu.vector_store %arg10[%c0_22, %c0_23], %27 {strides = array<i32>} : memref<8x128xf32, #tpu.memory_space<vmem>>, vector<8x128xf32>,
    return
  }
  func.func @transform_0(%arg0: i32) -> (i32, i32) {
    %c0_i32 = arith.constant 0 : i32
    %c0_i32_0 = arith.constant 0 : i32
    return %arg0, %c0_i32 : i32, i32
  }
  func.func @transform_1(%arg0: i32) -> (i32, i32) {
    %c0_i32 = arith.constant 0 : i32
    %c0_i32_0 = arith.constant 0 : i32
    %c0_i32_1 = arith.constant 0 : i32
    return %c0_i32, %c0_i32_0 : i32, i32
  }
  func.func @transform_2(%arg0: i32) -> (i32, i32) {
    %c0_i32 = arith.constant 0 : i32
    %c0_i32_0 = arith.constant 0 : i32
    %c0_i32_1 = arith.constant 0 : i32
    return %c0_i32, %c0_i32_0 : i32, i32
  }
  func.func @transform_3(%arg0: i32) -> (i32, i32) {
    %c0_i32 = arith.constant 0 : i32
    %c0_i32_0 = arith.constant 0 : i32
    %c0_i32_1 = arith.constant 0 : i32
    return %c0_i32, %c0_i32_0 : i32, i32
  }
  func.func @transform_4(%arg0: i32) -> (i32, i32) {
    %c0_i32 = arith.constant 0 : i32
    %c0_i32_0 = arith.constant 0 : i32
    %c0_i32_1 = arith.constant 0 : i32
    return %c0_i32, %c0_i32_0 : i32, i32
  }
  func.func @transform_5(%arg0: i32) -> (i32, i32) {
    %c0_i32 = arith.constant 0 : i32
    %c0_i32_0 = arith.constant 0 : i32
    %c0_i32_1 = arith.constant 0 : i32
    return %c0_i32, %c0_i32_0 : i32, i32
  }
  func.func @transform_6(%arg0: i32) -> (i32, i32) {
    %c0_i32 = arith.constant 0 : i32
    %c0_i32_0 = arith.constant 0 : i32
    %c0_i32_1 = arith.constant 0 : i32
    return %c0_i32, %c0_i32_0 : i32, i32
  }
  func.func @transform_7(%arg0: i32) -> (i32, i32) {
    %c0_i32 = arith.constant 0 : i32
    %c0_i32_0 = arith.constant 0 : i32
    %c0_i32_1 = arith.constant 0 : i32
    return %c0_i32, %c0_i32_0 : i32, i32
  }
  func.func @transform_8(%arg0: i32) -> (i32, i32) {
    %c0_i32 = arith.constant 0 : i32
    %c0_i32_0 = arith.constant 0 : i32
    %c0_i32_1 = arith.constant 0 : i32
    return %c0_i32, %c0_i32_0 : i32, i32
  }
  func.func @transform_9(%arg0: i32) -> (i32, i32) {
    %c0_i32 = arith.constant 0 : i32
    %c0_i32_0 = arith.constant 0 : i32
    return %arg0, %c0_i32 : i32, i32
  }
}

</mosaic_0001>

<llo_original>
// kernel: tpu_custom_call.1
$region0: #{tpu_custom_call.1}
  #allocation0 [shape = 'u32[]', space=smem, size = 0x4, offset = 0x4, fixed_abs, tag = 'smem constant byte address 0x4 - core index']
  #allocation1 [shape = 'u32[144,128]{1,0:T(1,128)}', space=vmem, size = 0x12000, scoped, tag = 'internal scratch']
  %s0 = inlined_call_operand.vmem [shape: bf16[8,128], index: 0, kind: input, shape index: {}]
  %s1 = inlined_call_operand.vmem [shape: bf16[128,64], index: 1, kind: input, shape index: {}]
  %s2 = inlined_call_operand.vmem [shape: f32[1,64], index: 2, kind: input, shape index: {}]
  %s3 = inlined_call_operand.vmem [shape: bf16[64,128], index: 3, kind: input, shape index: {}]
  %s4 = inlined_call_operand.vmem [shape: f32[1,128], index: 4, kind: input, shape index: {}]
  %s5 = inlined_call_operand.hbm [shape: bf16[128,1024], index: 5, kind: input, shape index: {}]
  %s6 = inlined_call_operand.vmem [shape: f32[1,1024], index: 6, kind: input, shape index: {}]
  %s7 = inlined_call_operand.hbm [shape: bf16[1024,128], index: 7, kind: input, shape index: {}]
  %s8 = inlined_call_operand.vmem [shape: f32[1,128], index: 8, kind: input, shape index: {}]
  %s9 = inlined_call_operand.hbm [shape: f32[8,128], index: 9, kind: output, shape index: {}]
  %s10 = sld [smem:[#allocation0]]
  $region54: #{tpu_custom_call.1} parent=0
    _
  %s12 = ssub.s32 1, %s10
  %s13 = scalar_select 0, %s12, %s10
  $region1: #{tpu_custom_call.1} parent=0
    #allocation2 [shape = 'u8[262144]{0}', space=vmem, size = 0x40000, scoped, tag = 'input window, operand 5, single buffered']
    #allocation3 [shape = 's32[1]{0}', space=sflag, size = 0x4, scoped, tag = 'scoped memory for tpu_custom_call.1']
    #allocation4 [shape = 's32[1]{0}', space=sflag, size = 0x4, scoped, tag = 'scoped memory for tpu_custom_call.1']
    #allocation5 [shape = 'u8[262144]{0}', space=vmem, size = 0x40000, scoped, tag = 'input window, operand 7, single buffered']
    #allocation6 [shape = 's32[1]{0}', space=sflag, size = 0x4, scoped, tag = 'scoped memory for tpu_custom_call.1']
    #allocation7 [shape = 'u8[4096]{0}', space=vmem, size = 0x1000, scoped, tag = 'output window, operand 0, single buffered']
    %14 = vsyncpa [#allocation3], 0
    %15 = vsyncpa [#allocation6], 0
    %16 = vsyncpa [#allocation4], 0
    // Predicated region
    $region2: #{tpu_custom_call.1} parent=1 // pred_check
      _
    $region3: #{tpu_custom_call.1} parent=1 // pred_check_branch
      %18 = sbr.rel (0) target = $region5
    $region4: #{tpu_custom_call.1} parent=1 // pred_region
      _
    $region5: #{tpu_custom_call.1} parent=1 // pred_fallthru
      _
    // Predicated region
    $region6: #{tpu_custom_call.1} parent=1 // pred_check
      _
    $region7: #{tpu_custom_call.1} parent=1 // pred_check_branch
      %20 = sbr.rel (0) target = $region9
    $region8: #{tpu_custom_call.1} parent=1 // pred_region
      _
    $region9: #{tpu_custom_call.1} parent=1 // pred_fallthru
      _
    // Predicated region
    $region10: #{tpu_custom_call.1} parent=1 // pred_check
      _
    $region11: #{tpu_custom_call.1} parent=1 // pred_check_branch
      %22 = sbr.rel (0) target = $region13
    $region12: #{tpu_custom_call.1} parent=1 // pred_region
      _
    $region13: #{tpu_custom_call.1} parent=1 // pred_fallthru
      _
    // Predicated region
    $region14: #{tpu_custom_call.1} parent=1 // pred_check
      _
    $region15: #{tpu_custom_call.1} parent=1 // pred_check_branch
      %24 = sbr.rel (0) target = $region17
    $region16: #{tpu_custom_call.1} parent=1 // pred_region
      _
    $region17: #{tpu_custom_call.1} parent=1 // pred_fallthru
      _
    // Predicated region
    $region18: #{tpu_custom_call.1} parent=1 // pred_check
      _
    $region19: #{tpu_custom_call.1} parent=1 // pred_check_branch
      %26 = sbr.rel (0) target = $region21
    $region20: #{tpu_custom_call.1} parent=1 // pred_region
      _
    $region21: #{tpu_custom_call.1} parent=1 // pred_fallthru
      _
    // Predicated region
    $region22: #{tpu_custom_call.1} parent=1 // pred_check
      _
    $region23: #{tpu_custom_call.1} parent=1 // pred_check_branch
      %28 = sbr.rel (0) target = $region25
    $region24: #{tpu_custom_call.1} parent=1 // pred_region
      %s30 = ssub.s32 8192, 8192
      %31 = vsyncadd [#allocation3], %s30
      %s32 = sshll.u32 [#allocation2], 4
      %s33 = int_to_ptr.vmem [resolvable:$true] %s32
      %38 = dma.hbm_to_vmem [thread:$0]  %s5, 8192, %s33, [#allocation3], 512, 512, 32
    $region25: #{tpu_custom_call.1} parent=1 // pred_fallthru
      _
    // Predicated region
    $region26: #{tpu_custom_call.1} parent=1 // pred_check
      _
    $region27: #{tpu_custom_call.1} parent=1 // pred_check_branch
      %40 = sbr.rel (0) target = $region29
    $region28: #{tpu_custom_call.1} parent=1 // pred_region
      _
    $region29: #{tpu_custom_call.1} parent=1 // pred_fallthru
      _
    // Predicated region
    $region30: #{tpu_custom_call.1} parent=1 // pred_check
      _
    $region31: #{tpu_custom_call.1} parent=1 // pred_check_branch
      %42 = sbr.rel (0) target = $region33
    $region32: #{tpu_custom_call.1} parent=1 // pred_region
      %s44 = ssub.s32 8192, 8192
      %45 = vsyncadd [#allocation6], %s44
      %s46 = sshll.u32 [#allocation5], 4
      %s47 = int_to_ptr.vmem [resolvable:$true] %s46
      %52 = dma.hbm_to_vmem [thread:$0]  %s7, 8192, %s47, [#allocation6], 64, 64, 4
    $region33: #{tpu_custom_call.1} parent=1 // pred_fallthru
      _
    // Predicated region
    $region34: #{tpu_custom_call.1} parent=1 // pred_check
      _
    $region35: #{tpu_custom_call.1} parent=1 // pred_check_branch
      %54 = sbr.rel (0) target = $region37
    $region36: #{tpu_custom_call.1} parent=1 // pred_region
      _
    $region37: #{tpu_custom_call.1} parent=1 // pred_fallthru
      _
    // Predicated region
    $region38: #{tpu_custom_call.1} parent=1 // pred_check
      _
    $region39: #{tpu_custom_call.1} parent=1 // pred_check_branch
      %56 = sbr.rel (0) target = $region41
    $region40: #{tpu_custom_call.1} parent=1 // pred_region
      %57 = dma.done [#allocation3], 8192
    $region41: #{tpu_custom_call.1} parent=1 // pred_fallthru
      _
    // Predicated region
    $region42: #{tpu_custom_call.1} parent=1 // pred_check
      _
    $region43: #{tpu_custom_call.1} parent=1 // pred_check_branch
      %59 = sbr.rel (0) target = $region45
    $region44: #{tpu_custom_call.1} parent=1 // pred_region
      %60 = dma.done [#allocation6], 8192
    $region45: #{tpu_custom_call.1} parent=1 // pred_fallthru
      _
    %v62 = vld [vmem:[%s0] sm:$0xf]
    %v63 = vld [vmem:[%s1] sm:$0xf]
    %v64 = vld [vmem:[%s1 + $0x4] sm:$0xf]
    %v65 = vld [vmem:[%s1 + $0x8] sm:$0xf]
    %v66 = vld [vmem:[%s1 + $0xc] sm:$0xf]
    %v67 = vld [vmem:[%s1 + $0x10] sm:$0xf]
    %v68 = vld [vmem:[%s1 + $0x14] sm:$0xf]
    %v69 = vld [vmem:[%s1 + $0x18] sm:$0xf]
    %v70 = vld [vmem:[%s1 + $0x1c] sm:$0xf]
    %v71 = vld [vmem:[%s1 + $0x20] sm:$0xf]
    %v72 = vld [vmem:[%s1 + $0x24] sm:$0xf]
    %v73 = vld [vmem:[%s1 + $0x28] sm:$0xf]
    %v74 = vld [vmem:[%s1 + $0x2c] sm:$0xf]
    %v75 = vld [vmem:[%s1 + $0x30] sm:$0xf]
    %v76 = vld [vmem:[%s1 + $0x34] sm:$0xf]
    %v77 = vld [vmem:[%s1 + $0x38] sm:$0xf]
    %v78 = vld [vmem:[%s1 + $0x3c] sm:$0xf]
    %v79 = vld [vmem:[%s2] sm:$0x1]
    %v81 = vlaneseq
    %v82 = vshrl.u32 %v81, 7
    %v83 = vsub.s32 0, %v82
    %v84 = vrot.slane %v79, %v83
    %v102 = vunpack.c.l.b16 %v63
    %v103 = vunpack.c.l.b16 %v64
    %v104 = vunpack.c.l.b16 %v65
    %v105 = vunpack.c.l.b16 %v66
    %v106 = vunpack.c.l.b16 %v67
    %v107 = vunpack.c.l.b16 %v68
    %v108 = vunpack.c.l.b16 %v69
    %v109 = vunpack.c.l.b16 %v70
    %v110 = vunpack.c.l.b16 %v71
    %v111 = vunpack.c.l.b16 %v72
    %v112 = vunpack.c.l.b16 %v73
    %v113 = vunpack.c.l.b16 %v74
    %v114 = vunpack.c.l.b16 %v75
    %v115 = vunpack.c.l.b16 %v76
    %v116 = vunpack.c.l.b16 %v77
    %v117 = vunpack.c.l.b16 %v78
    %v118 = vpack.c.b16 %v103, %v102
    %v119 = vpack.c.b16 %v105, %v104
    %v120 = vpack.c.b16 %v107, %v106
    %v121 = vpack.c.b16 %v109, %v108
    %v122 = vpack.c.b16 %v111, %v110
    %v123 = vpack.c.b16 %v113, %v112
    %v124 = vpack.c.b16 %v115, %v114
    %v125 = vpack.c.b16 %v117, %v116
    %134 = vmatprep.subr.bf16.mxu0 0
    %135 = vmatpush1.bf16.msra.mxu0 %v118
    %136 = vmatprep.subr.bf16.mxu0 0
    %137 = vmatpush1.bf16.msra.mxu0 %v119
    %138 = vmatprep.subr.bf16.mxu0 0
    %139 = vmatpush1.bf16.msra.mxu0 %v120
    %140 = vmatprep.subr.bf16.mxu0 0
    %141 = vmatpush1.bf16.msra.mxu0 %v121
    %142 = vmatprep.subr.bf16.mxu0 0
    %143 = vmatpush1.bf16.msra.mxu0 %v122
    %144 = vmatprep.subr.bf16.mxu0 0
    %145 = vmatpush1.bf16.msra.mxu0 %v123
    %146 = vmatprep.subr.bf16.mxu0 0
    %147 = vmatpush1.bf16.msra.mxu0 %v124
    %148 = vmatprep.subr.bf16.mxu0 0
    %149 = vmatpush1.bf16.msra.mxu0 %v125
    %150 = vmatprep.subr.bf16.mxu0 0
    %151 = vmatpush1.bf16.msra.mxu0 0
    %152 = vmatprep.subr.bf16.mxu0 0
    %153 = vmatpush1.bf16.msra.mxu0 0
    %154 = vmatprep.subr.bf16.mxu0 0
    %155 = vmatpush1.bf16.msra.mxu0 0
    %156 = vmatprep.subr.bf16.mxu0 0
    %157 = vmatpush1.bf16.msra.mxu0 0
    %158 = vmatprep.subr.bf16.mxu0 0
    %159 = vmatpush1.bf16.msra.mxu0 0
    %160 = vmatprep.subr.bf16.mxu0 0
    %161 = vmatpush1.bf16.msra.mxu0 0
    %162 = vmatprep.subr.bf16.mxu0 0
    %163 = vmatpush1.bf16.msra.mxu0 0
    %164 = vmatprep.subr.bf16.mxu0 0
    %165 = vmatpush1.bf16.msra.mxu0 0
    %166 = vmatprep.mubr.bf16.mxu0 0
    %167 = vmatmul.mubr.bf16.gmra.mrb[0].mxu0 %v62
    %v168 = vpop.f32.mrb[0].mxu0
    %v169 = vadd.f32 %v84, %v168
    %v170 = vpop.f32.mrb[0].mxu0
    %v171 = vpop.f32.mrb[0].mxu0
    %v172 = vpop.f32.mrb[0].mxu0
    %173 = vdwg.mxu0
    %v174 = vmax.f32 %v169, 0.0
    %v175 = vpack.c.bf16 %v174, %v174
    %v176 = vld [vmem:[%s3] sm:$0xf]
    %v177 = vld [vmem:[%s3 + $0x4] sm:$0xf]
    %v178 = vld [vmem:[%s3 + $0x8] sm:$0xf]
    %v179 = vld [vmem:[%s3 + $0xc] sm:$0xf]
    %v180 = vld [vmem:[%s3 + $0x10] sm:$0xf]
    %v181 = vld [vmem:[%s3 + $0x14] sm:$0xf]
    %v182 = vld [vmem:[%s3 + $0x18] sm:$0xf]
    %v183 = vld [vmem:[%s3 + $0x1c] sm:$0xf]
    %v184 = vld [vmem:[%s4] sm:$0x1]
    %v186 = vlaneseq
    %v187 = vshrl.u32 %v186, 7
    %v188 = vsub.s32 0, %v187
    %v189 = vrot.slane %v184, %v188
    %v199 = vunpack.c.l.b16 %v176
    %v200 = vunpack.c.l.b16 %v177
    %v201 = vunpack.c.l.b16 %v178
    %v202 = vunpack.c.l.b16 %v179
    %v203 = vunpack.c.l.b16 %v180
    %v204 = vunpack.c.l.b16 %v181
    %v205 = vunpack.c.l.b16 %v182
    %v206 = vunpack.c.l.b16 %v183
    %v207 = vpack.c.b16 %v200, %v199
    %v208 = vpack.c.b16 %v202, %v201
    %v209 = vpack.c.b16 %v204, %v203
    %v210 = vpack.c.b16 %v206, %v205
    %vm215 = vcmask 523264
    %v217 = vsel %vm215, %v175, 0
    %219 = vmatprep.subr.bf16.mxu0 0
    %220 = vmatpush1.bf16.msra.mxu0 %v207
    %221 = vmatprep.subr.bf16.mxu0 0
    %222 = vmatpush1.bf16.msra.mxu0 %v208
    %223 = vmatprep.subr.bf16.mxu0 0
    %224 = vmatpush1.bf16.msra.mxu0 %v209
    %225 = vmatprep.subr.bf16.mxu0 0
    %226 = vmatpush1.bf16.msra.mxu0 %v210
    %227 = vmatprep.subr.bf16.mxu0 0
    %228 = vmatpush1.bf16.msra.mxu0 0
    %229 = vmatprep.subr.bf16.mxu0 0
    %230 = vmatpush1.bf16.msra.mxu0 0
    %231 = vmatprep.subr.bf16.mxu0 0
    %232 = vmatpush1.bf16.msra.mxu0 0
    %233 = vmatprep.subr.bf16.mxu0 0
    %234 = vmatpush1.bf16.msra.mxu0 0
    %235 = vmatprep.subr.bf16.mxu0 0
    %236 = vmatpush1.bf16.msra.mxu0 0
    %237 = vmatprep.subr.bf16.mxu0 0
    %238 = vmatpush1.bf16.msra.mxu0 0
    %239 = vmatprep.subr.bf16.mxu0 0
    %240 = vmatpush1.bf16.msra.mxu0 0
    %241 = vmatprep.subr.bf16.mxu0 0
    %242 = vmatpush1.bf16.msra.mxu0 0
    %243 = vmatprep.subr.bf16.mxu0 0
    %244 = vmatpush1.bf16.msra.mxu0 0
    %245 = vmatprep.subr.bf16.mxu0 0
    %246 = vmatpush1.bf16.msra.mxu0 0
    %247 = vmatprep.subr.bf16.mxu0 0
    %248 = vmatpush1.bf16.msra.mxu0 0
    %249 = vmatprep.subr.bf16.mxu0 0
    %250 = vmatpush1.bf16.msra.mxu0 0
    %251 = vmatprep.mubr.bf16.mxu0 0
    %252 = vmatmul.mubr.bf16.gmra.mrb[0].mxu0 %v217
    %v253 = vpop.f32.mrb[0].mxu0
    %v254 = vadd.f32 %v189, %v253
    %v255 = vpop.f32.mrb[0].mxu0
    %v256 = vpop.f32.mrb[0].mxu0
    %v257 = vpop.f32.mrb[0].mxu0
    %258 = vdwg.mxu0
    %v259 = vpack.c.bf16 %v254, %v254
    %v260 = vld [vmem:[#allocation2] sm:$0xff]
    %v261 = vld [vmem:[#allocation2 + $0x8] sm:$0xff]
    %v262 = vld [vmem:[#allocation2 + $0x10] sm:$0xff]
    %v263 = vld [vmem:[#allocation2 + $0x18] sm:$0xff]
    %v264 = vld [vmem:[#allocation2 + $0x20] sm:$0xff]
    %v265 = vld [vmem:[#allocation2 + $0x28] sm:$0xff]
    %v266 = vld [vmem:[#allocation2 + $0x30] sm:$0xff]
    %v267 = vld [vmem:[#allocation2 + $0x38] sm:$0xff]
    %v268 = vld [vmem:[#allocation2 + $0x40] sm:$0xff]
    %v269 = vld [vmem:[#allocation2 + $0x48] sm:$0xff]
    %v270 = vld [vmem:[#allocation2 + $0x50] sm:$0xff]
    %v271 = vld [vmem:[#allocation2 + $0x58] sm:$0xff]
    %v272 = vld [vmem:[#allocation2 + $0x60] sm:$0xff]
    %v273 = vld [vmem:[#allocation2 + $0x68] sm:$0xff]
    %v274 = vld [vmem:[#allocation2 + $0x70] sm:$0xff]
    %v275 = vld [vmem:[#allocation2 + $0x78] sm:$0xff]
    %v276 = vld [vmem:[#allocation2 + $0x80] sm:$0xff]
    %v277 = vld [vmem:[#allocation2 + $0x88] sm:$0xff]
    %v278 = vld [vmem:[#allocation2 + $0x90] sm:$0xff]
    %v279 = vld [vmem:[#allocation2 + $0x98] sm:$0xff]
    %v280 = vld [vmem:[#allocation2 + $0xa0] sm:$0xff]
    %v281 = vld [vmem:[#allocation2 + $0xa8] sm:$0xff]
    %v282 = vld [vmem:[#allocation2 + $0xb0] sm:$0xff]
    %v283 = vld [vmem:[#allocation2 + $0xb8] sm:$0xff]
    %v284 = vld [vmem:[#allocation2 + $0xc0] sm:$0xff]
    %v285 = vld [vmem:[#allocation2 + $0xc8] sm:$0xff]
    %v286 = vld [vmem:[#allocation2 + $0xd0] sm:$0xff]
    %v287 = vld [vmem:[#allocation2 + $0xd8] sm:$0xff]
    %v288 = vld [vmem:[#allocation2 + $0xe0] sm:$0xff]
    %v289 = vld [vmem:[#allocation2 + $0xe8] sm:$0xff]
    %v290 = vld [vmem:[#allocation2 + $0xf0] sm:$0xff]
    %v291 = vld [vmem:[#allocation2 + $0xf8] sm:$0xff]
    %v292 = vld [vmem:[#allocation2 + $0x100] sm:$0xff]
    %v293 = vld [vmem:[#allocation2 + $0x108] sm:$0xff]
    %v294 = vld [vmem:[#allocation2 + $0x110] sm:$0xff]
    %v295 = vld [vmem:[#allocation2 + $0x118] sm:$0xff]
    %v296 = vld [vmem:[#allocation2 + $0x120] sm:$0xff]
    %v297 = vld [vmem:[#allocation2 + $0x128] sm:$0xff]
    %v298 = vld [vmem:[#allocation2 + $0x130] sm:$0xff]
    %v299 = vld [vmem:[#allocation2 + $0x138] sm:$0xff]
    %v300 = vld [vmem:[#allocation2 + $0x140] sm:$0xff]
    %v301 = vld [vmem:[#allocation2 + $0x148] sm:$0xff]
    %v302 = vld [vmem:[#allocation2 + $0x150] sm:$0xff]
    %v303 = vld [vmem:[#allocation2 + $0x158] sm:$0xff]
    %v304 = vld [vmem:[#allocation2 + $0x160] sm:$0xff]
    %v305 = vld [vmem:[#allocation2 + $0x168] sm:$0xff]
    %v306 = vld [vmem:[#allocation2 + $0x170] sm:$0xff]
    %v307 = vld [vmem:[#allocation2 + $0x178] sm:$0xff]
    %v308 = vld [vmem:[#allocation2 + $0x180] sm:$0xff]
    %v309 = vld [vmem:[#allocation2 + $0x188] sm:$0xff]
    %v310 = vld [vmem:[#allocation2 + $0x190] sm:$0xff]
    %v311 = vld [vmem:[#allocation2 + $0x198] sm:$0xff]
    %v312 = vld [vmem:[#allocation2 + $0x1a0] sm:$0xff]
    %v313 = vld [vmem:[#allocation2 + $0x1a8] sm:$0xff]
    %v314 = vld [vmem:[#allocation2 + $0x1b0] sm:$0xff]
    %v315 = vld [vmem:[#allocation2 + $0x1b8] sm:$0xff]
    %v316 = vld [vmem:[#allocation2 + $0x1c0] sm:$0xff]
    %v317 = vld [vmem:[#allocation2 + $0x1c8] sm:$0xff]
    %v318 = vld [vmem:[#allocation2 + $0x1d0] sm:$0xff]
    %v319 = vld [vmem:[#allocation2 + $0x1d8] sm:$0xff]
    %v320 = vld [vmem:[#allocation2 + $0x1e0] sm:$0xff]
    %v321 = vld [vmem:[#allocation2 + $0x1e8] sm:$0xff]
    %v322 = vld [vmem:[#allocation2 + $0x1f0] sm:$0xff]
    %v323 = vld [vmem:[#allocation2 + $0x1f8] sm:$0xff]
    %v324 = vld [vmem:[%s6] sm:$0xff]
    %v326 = vlaneseq
    %v327 = vshrl.u32 %v326, 7
    %v328 = vsub.s32 0, %v327
    %v329 = vrot.slane %v324, %v328
    %v330 = vlaneseq
    %v331 = vshrl.u32 %v330, 7
    %v332 = vsub.s32 1, %v331
    %v333 = vrot.slane %v324, %v332
    %v334 = vlaneseq
    %v335 = vshrl.u32 %v334, 7
    %v336 = vsub.s32 2, %v335
    %v337 = vrot.slane %v324, %v336
    %v338 = vlaneseq
    %v339 = vshrl.u32 %v338, 7
    %v340 = vsub.s32 3, %v339
    %v341 = vrot.slane %v324, %v340
    %v342 = vlaneseq
    %v343 = vshrl.u32 %v342, 7
    %v344 = vsub.s32 4, %v343
    %v345 = vrot.slane %v324, %v344
    %v346 = vlaneseq
    %v347 = vshrl.u32 %v346, 7
    %v348 = vsub.s32 5, %v347
    %v349 = vrot.slane %v324, %v348
    %v350 = vlaneseq
    %v351 = vshrl.u32 %v350, 7
    %v352 = vsub.s32 6, %v351
    %v353 = vrot.slane %v324, %v352
    %v354 = vlaneseq
    %v355 = vshrl.u32 %v354, 7
    %v356 = vsub.s32 7, %v355
    %v357 = vrot.slane %v324, %v356
    %v430 = vunpack.c.l.b16 %v260
    %v431 = vunpack.c.h.b16 %v260
    %v432 = vunpack.c.l.b16 %v261
    %v433 = vunpack.c.h.b16 %v261
    %v434 = vunpack.c.l.b16 %v262
    %v435 = vunpack.c.h.b16 %v262
    %v436 = vunpack.c.l.b16 %v263
    %v437 = vunpack.c.h.b16 %v263
    %v438 = vunpack.c.l.b16 %v264
    %v439 = vunpack.c.h.b16 %v264
    %v440 = vunpack.c.l.b16 %v265
    %v441 = vunpack.c.h.b16 %v265
    %v442 = vunpack.c.l.b16 %v266
    %v443 = vunpack.c.h.b16 %v266
    %v444 = vunpack.c.l.b16 %v267
    %v445 = vunpack.c.h.b16 %v267
    %v446 = vunpack.c.l.b16 %v268
    %v447 = vunpack.c.h.b16 %v268
    %v448 = vunpack.c.l.b16 %v269
    %v449 = vunpack.c.h.b16 %v269
    %v450 = vunpack.c.l.b16 %v270
    %v451 = vunpack.c.h.b16 %v270
    %v452 = vunpack.c.l.b16 %v271
    %v453 = vunpack.c.h.b16 %v271
    %v454 = vunpack.c.l.b16 %v272
    %v455 = vunpack.c.h.b16 %v272
    %v456 = vunpack.c.l.b16 %v273
    %v457 = vunpack.c.h.b16 %v273
    %v458 = vunpack.c.l.b16 %v274
    %v459 = vunpack.c.h.b16 %v274
    %v460 = vunpack.c.l.b16 %v275
    %v461 = vunpack.c.h.b16 %v275
    %v462 = vunpack.c.l.b16 %v276
    %v463 = vunpack.c.h.b16 %v276
    %v464 = vunpack.c.l.b16 %v277
    %v465 = vunpack.c.h.b16 %v277
    %v466 = vunpack.c.l.b16 %v278
    %v467 = vunpack.c.h.b16 %v278
    %v468 = vunpack.c.l.b16 %v279
    %v469 = vunpack.c.h.b16 %v279
    %v470 = vunpack.c.l.b16 %v280
    %v471 = vunpack.c.h.b16 %v280
    %v472 = vunpack.c.l.b16 %v281
    %v473 = vunpack.c.h.b16 %v281
    %v474 = vunpack.c.l.b16 %v282
    %v475 = vunpack.c.h.b16 %v282
    %v476 = vunpack.c.l.b16 %v283
    %v477 = vunpack.c.h.b16 %v283
    %v478 = vunpack.c.l.b16 %v284
    %v479 = vunpack.c.h.b16 %v284
    %v480 = vunpack.c.l.b16 %v285
    %v481 = vunpack.c.h.b16 %v285
    %v482 = vunpack.c.l.b16 %v286
    %v483 = vunpack.c.h.b16 %v286
    %v484 = vunpack.c.l.b16 %v287
    %v485 = vunpack.c.h.b16 %v287
    %v486 = vunpack.c.l.b16 %v288
    %v487 = vunpack.c.h.b16 %v288
    %v488 = vunpack.c.l.b16 %v289
    %v489 = vunpack.c.h.b16 %v289
    %v490 = vunpack.c.l.b16 %v290
    %v491 = vunpack.c.h.b16 %v290
    %v492 = vunpack.c.l.b16 %v291
    %v493 = vunpack.c.h.b16 %v291
    %v494 = vunpack.c.l.b16 %v292
    %v495 = vunpack.c.h.b16 %v292
    %v496 = vunpack.c.l.b16 %v293
    %v497 = vunpack.c.h.b16 %v293
    %v498 = vunpack.c.l.b16 %v294
    %v499 = vunpack.c.h.b16 %v294
    %v500 = vunpack.c.l.b16 %v295
    %v501 = vunpack.c.h.b16 %v295
    %v502 = vunpack.c.l.b16 %v296
    %v503 = vunpack.c.h.b16 %v296
    %v504 = vunpack.c.l.b16 %v297
    %v505 = vunpack.c.h.b16 %v297
    %v506 = vunpack.c.l.b16 %v298
    %v507 = vunpack.c.h.b16 %v298
    %v508 = vunpack.c.l.b16 %v299
    %v509 = vunpack.c.h.b16 %v299
    %v510 = vunpack.c.l.b16 %v300
    %v511 = vunpack.c.h.b16 %v300
    %v512 = vunpack.c.l.b16 %v301
    %v513 = vunpack.c.h.b16 %v301
    %v514 = vunpack.c.l.b16 %v302
    %v515 = vunpack.c.h.b16 %v302
    %v516 = vunpack.c.l.b16 %v303
    %v517 = vunpack.c.h.b16 %v303
    %v518 = vunpack.c.l.b16 %v304
    %v519 = vunpack.c.h.b16 %v304
    %v520 = vunpack.c.l.b16 %v305
    %v521 = vunpack.c.h.b16 %v305
    %v522 = vunpack.c.l.b16 %v306
    %v523 = vunpack.c.h.b16 %v306
    %v524 = vunpack.c.l.b16 %v307
    %v525 = vunpack.c.h.b16 %v307
    %v526 = vunpack.c.l.b16 %v308
    %v527 = vunpack.c.h.b16 %v308
    %v528 = vunpack.c.l.b16 %v309
    %v529 = vunpack.c.h.b16 %v309
    %v530 = vunpack.c.l.b16 %v310
    %v531 = vunpack.c.h.b16 %v310
    %v532 = vunpack.c.l.b16 %v311
    %v533 = vunpack.c.h.b16 %v311
    %v534 = vunpack.c.l.b16 %v312
    %v535 = vunpack.c.h.b16 %v312
    %v536 = vunpack.c.l.b16 %v313
    %v537 = vunpack.c.h.b16 %v313
    %v538 = vunpack.c.l.b16 %v314
    %v539 = vunpack.c.h.b16 %v314
    %v540 = vunpack.c.l.b16 %v315
    %v541 = vunpack.c.h.b16 %v315
    %v542 = vunpack.c.l.b16 %v316
    %v543 = vunpack.c.h.b16 %v316
    %v544 = vunpack.c.l.b16 %v317
    %v545 = vunpack.c.h.b16 %v317
    %v546 = vunpack.c.l.b16 %v318
    %v547 = vunpack.c.h.b16 %v318
    %v548 = vunpack.c.l.b16 %v319
    %v549 = vunpack.c.h.b16 %v319
    %v550 = vunpack.c.l.b16 %v320
    %v551 = vunpack.c.h.b16 %v320
    %v552 = vunpack.c.l.b16 %v321
    %v553 = vunpack.c.h.b16 %v321
    %v554 = vunpack.c.l.b16 %v322
    %v555 = vunpack.c.h.b16 %v322
    %v556 = vunpack.c.l.b16 %v323
    %v557 = vunpack.c.h.b16 %v323
    %v558 = vpack.c.b16 %v438, %v430
    %v559 = vpack.c.b16 %v439, %v431
    %v560 = vpack.c.b16 %v440, %v432
    %v561 = vpack.c.b16 %v441, %v433
    %v562 = vpack.c.b16 %v442, %v434
    %v563 = vpack.c.b16 %v443, %v435
    %v564 = vpack.c.b16 %v444, %v436
    %v565 = vpack.c.b16 %v445, %v437
    %v566 = vpack.c.b16 %v454, %v446
    %v567 = vpack.c.b16 %v455, %v447
    %v568 = vpack.c.b16 %v456, %v448
    %v569 = vpack.c.b16 %v457, %v449
    %v570 = vpack.c.b16 %v458, %v450
    %v571 = vpack.c.b16 %v459, %v451
    %v572 = vpack.c.b16 %v460, %v452
    %v573 = vpack.c.b16 %v461, %v453
    %v574 = vpack.c.b16 %v470, %v462
    %v575 = vpack.c.b16 %v471, %v463
    %v576 = vpack.c.b16 %v472, %v464
    %v577 = vpack.c.b16 %v473, %v465
    %v578 = vpack.c.b16 %v474, %v466
    %v579 = vpack.c.b16 %v475, %v467
    %v580 = vpack.c.b16 %v476, %v468
    %v581 = vpack.c.b16 %v477, %v469
    %v582 = vpack.c.b16 %v486, %v478
    %v583 = vpack.c.b16 %v487, %v479
    %v584 = vpack.c.b16 %v488, %v480
    %v585 = vpack.c.b16 %v489, %v481
    %v586 = vpack.c.b16 %v490, %v482
    %v587 = vpack.c.b16 %v491, %v483
    %v588 = vpack.c.b16 %v492, %v484
    %v589 = vpack.c.b16 %v493, %v485
    %v590 = vpack.c.b16 %v502, %v494
    %v591 = vpack.c.b16 %v503, %v495
    %v592 = vpack.c.b16 %v504, %v496
    %v593 = vpack.c.b16 %v505, %v497
    %v594 = vpack.c.b16 %v506, %v498
    %v595 = vpack.c.b16 %v507, %v499
    %v596 = vpack.c.b16 %v508, %v500
    %v597 = vpack.c.b16 %v509, %v501
    %v598 = vpack.c.b16 %v518, %v510
    %v599 = vpack.c.b16 %v519, %v511
    %v600 = vpack.c.b16 %v520, %v512
    %v601 = vpack.c.b16 %v521, %v513
    %v602 = vpack.c.b16 %v522, %v514
    %v603 = vpack.c.b16 %v523, %v515
    %v604 = vpack.c.b16 %v524, %v516
    %v605 = vpack.c.b16 %v525, %v517
    %v606 = vpack.c.b16 %v534, %v526
    %v607 = vpack.c.b16 %v535, %v527
    %v608 = vpack.c.b16 %v536, %v528
    %v609 = vpack.c.b16 %v537, %v529
    %v610 = vpack.c.b16 %v538, %v530
    %v611 = vpack.c.b16 %v539, %v531
    %v612 = vpack.c.b16 %v540, %v532
    %v613 = vpack.c.b16 %v541, %v533
    %v614 = vpack.c.b16 %v550, %v542
    %v615 = vpack.c.b16 %v551, %v543
    %v616 = vpack.c.b16 %v552, %v544
    %v617 = vpack.c.b16 %v553, %v545
    %v618 = vpack.c.b16 %v554, %v546
    %v619 = vpack.c.b16 %v555, %v547
    %v620 = vpack.c.b16 %v556, %v548
    %v621 = vpack.c.b16 %v557, %v549
    %686 = vmatprep.subr.bf16.mxu0 %v559
    %687 = vmatpush1.bf16.msra.mxu0 %v558
    %688 = vmatprep.subr.bf16.mxu0 %v567
    %689 = vmatpush1.bf16.msra.mxu0 %v566
    %690 = vmatprep.subr.bf16.mxu0 %v575
    %691 = vmatpush1.bf16.msra.mxu0 %v574
    %692 = vmatprep.subr.bf16.mxu0 %v583
    %693 = vmatpush1.bf16.msra.mxu0 %v582
    %694 = vmatprep.subr.bf16.mxu0 %v591
    %695 = vmatpush1.bf16.msra.mxu0 %v590
    %696 = vmatprep.subr.bf16.mxu0 %v599
    %697 = vmatpush1.bf16.msra.mxu0 %v598
    %698 = vmatprep.subr.bf16.mxu0 %v607
    %699 = vmatpush1.bf16.msra.mxu0 %v606
    %700 = vmatprep.subr.bf16.mxu0 %v615
    %701 = vmatpush1.bf16.msra.mxu0 %v614
    %702 = vmatprep.subr.bf16.mxu0 0
    %703 = vmatpush1.bf16.msra.mxu0 0
    %704 = vmatprep.subr.bf16.mxu0 0
    %705 = vmatpush1.bf16.msra.mxu0 0
    %706 = vmatprep.subr.bf16.mxu0 0
    %707 = vmatpush1.bf16.msra.mxu0 0
    %708 = vmatprep.subr.bf16.mxu0 0
    %709 = vmatpush1.bf16.msra.mxu0 0
    %710 = vmatprep.subr.bf16.mxu0 0
    %711 = vmatpush1.bf16.msra.mxu0 0
    %712 = vmatprep.subr.bf16.mxu0 0
    %713 = vmatpush1.bf16.msra.mxu0 0
    %714 = vmatprep.subr.bf16.mxu0 0
    %715 = vmatpush1.bf16.msra.mxu0 0
    %716 = vmatprep.subr.bf16.mxu0 0
    %717 = vmatpush1.bf16.msra.mxu0 0
    %718 = vmatprep.mubr.bf16.mxu0 0
    %719 = vmatmul.mubr.bf16.gmra.mrb[0].mxu0 %v259
    %v720 = vpop.f32.mrb[0].mxu0
    %v721 = vadd.f32 %v329, %v720
    %v722 = vpop.f32.mrb[0].mxu0
    %v723 = vadd.f32 %v333, %v722
    %v724 = vpop.f32.mrb[0].mxu0
    %v725 = vpop.f32.mrb[0].mxu0
    %726 = vdwg.mxu0
    %727 = vmatprep.subr.bf16.mxu0 %v561
    %728 = vmatpush1.bf16.msra.mxu0 %v560
    %729 = vmatprep.subr.bf16.mxu0 %v569
    %730 = vmatpush1.bf16.msra.mxu0 %v568
    %731 = vmatprep.subr.bf16.mxu0 %v577
    %732 = vmatpush1.bf16.msra.mxu0 %v576
    %733 = vmatprep.subr.bf16.mxu0 %v585
    %734 = vmatpush1.bf16.msra.mxu0 %v584
    %735 = vmatprep.subr.bf16.mxu0 %v593
    %736 = vmatpush1.bf16.msra.mxu0 %v592
    %737 = vmatprep.subr.bf16.mxu0 %v601
    %738 = vmatpush1.bf16.msra.mxu0 %v600
    %739 = vmatprep.subr.bf16.mxu0 %v609
    %740 = vmatpush1.bf16.msra.mxu0 %v608
    %741 = vmatprep.subr.bf16.mxu0 %v617
    %742 = vmatpush1.bf16.msra.mxu0 %v616
    %743 = vmatprep.subr.bf16.mxu0 0
    %744 = vmatpush1.bf16.msra.mxu0 0
    %745 = vmatprep.subr.bf16.mxu0 0
    %746 = vmatpush1.bf16.msra.mxu0 0
    %747 = vmatprep.subr.bf16.mxu0 0
    %748 = vmatpush1.bf16.msra.mxu0 0
    %749 = vmatprep.subr.bf16.mxu0 0
    %750 = vmatpush1.bf16.msra.mxu0 0
    %751 = vmatprep.subr.bf16.mxu0 0
    %752 = vmatpush1.bf16.msra.mxu0 0
    %753 = vmatprep.subr.bf16.mxu0 0
    %754 = vmatpush1.bf16.msra.mxu0 0
    %755 = vmatprep.subr.bf16.mxu0 0
    %756 = vmatpush1.bf16.msra.mxu0 0
    %757 = vmatprep.subr.bf16.mxu0 0
    %758 = vmatpush1.bf16.msra.mxu0 0
    %759 = vmatprep.mubr.bf16.mxu0 0
    %760 = vmatmul.mubr.bf16.gmra.mrb[0].mxu0 %v259
    %v761 = vpop.f32.mrb[0].mxu0
    %v762 = vadd.f32 %v337, %v761
    %v763 = vpop.f32.mrb[0].mxu0
    %v764 = vadd.f32 %v341, %v763
    %v765 = vpop.f32.mrb[0].mxu0
    %v766 = vpop.f32.mrb[0].mxu0
    %767 = vdwg.mxu0
    %768 = vmatprep.subr.bf16.mxu0 %v563
    %769 = vmatpush1.bf16.msra.mxu0 %v562
    %770 = vmatprep.subr.bf16.mxu0 %v571
    %771 = vmatpush1.bf16.msra.mxu0 %v570
    %772 = vmatprep.subr.bf16.mxu0 %v579
    %773 = vmatpush1.bf16.msra.mxu0 %v578
    %774 = vmatprep.subr.bf16.mxu0 %v587
    %775 = vmatpush1.bf16.msra.mxu0 %v586
    %776 = vmatprep.subr.bf16.mxu0 %v595
    %777 = vmatpush1.bf16.msra.mxu0 %v594
    %778 = vmatprep.subr.bf16.mxu0 %v603
    %779 = vmatpush1.bf16.msra.mxu0 %v602
    %780 = vmatprep.subr.bf16.mxu0 %v611
    %781 = vmatpush1.bf16.msra.mxu0 %v610
    %782 = vmatprep.subr.bf16.mxu0 %v619
    %783 = vmatpush1.bf16.msra.mxu0 %v618
    %784 = vmatprep.subr.bf16.mxu0 0
    %785 = vmatpush1.bf16.msra.mxu0 0
    %786 = vmatprep.subr.bf16.mxu0 0
    %787 = vmatpush1.bf16.msra.mxu0 0
    %788 = vmatprep.subr.bf16.mxu0 0
    %789 = vmatpush1.bf16.msra.mxu0 0
    %790 = vmatprep.subr.bf16.mxu0 0
    %791 = vmatpush1.bf16.msra.mxu0 0
    %792 = vmatprep.subr.bf16.mxu0 0
    %793 = vmatpush1.bf16.msra.mxu0 0
    %794 = vmatprep.subr.bf16.mxu0 0
    %795 = vmatpush1.bf16.msra.mxu0 0
    %796 = vmatprep.subr.bf16.mxu0 0
    %797 = vmatpush1.bf16.msra.mxu0 0
    %798 = vmatprep.subr.bf16.mxu0 0
    %799 = vmatpush1.bf16.msra.mxu0 0
    %800 = vmatprep.mubr.bf16.mxu0 0
    %801 = vmatmul.mubr.bf16.gmra.mrb[0].mxu0 %v259
    %v802 = vpop.f32.mrb[0].mxu0
    %v803 = vadd.f32 %v345, %v802
    %v804 = vpop.f32.mrb[0].mxu0
    %v805 = vadd.f32 %v349, %v804
    %v806 = vpop.f32.mrb[0].mxu0
    %v807 = vpop.f32.mrb[0].mxu0
    %808 = vdwg.mxu0
    %809 = vmatprep.subr.bf16.mxu0 %v565
    %810 = vmatpush1.bf16.msra.mxu0 %v564
    %811 = vmatprep.subr.bf16.mxu0 %v573
    %812 = vmatpush1.bf16.msra.mxu0 %v572
    %813 = vmatprep.subr.bf16.mxu0 %v581
    %814 = vmatpush1.bf16.msra.mxu0 %v580
    %815 = vmatprep.subr.bf16.mxu0 %v589
    %816 = vmatpush1.bf16.msra.mxu0 %v588
    %817 = vmatprep.subr.bf16.mxu0 %v597
    %818 = vmatpush1.bf16.msra.mxu0 %v596
    %819 = vmatprep.subr.bf16.mxu0 %v605
    %820 = vmatpush1.bf16.msra.mxu0 %v604
    %821 = vmatprep.subr.bf16.mxu0 %v613
    %822 = vmatpush1.bf16.msra.mxu0 %v612
    %823 = vmatprep.subr.bf16.mxu0 %v621
    %824 = vmatpush1.bf16.msra.mxu0 %v620
    %825 = vmatprep.subr.bf16.mxu0 0
    %826 = vmatpush1.bf16.msra.mxu0 0
    %827 = vmatprep.subr.bf16.mxu0 0
    %828 = vmatpush1.bf16.msra.mxu0 0
    %829 = vmatprep.subr.bf16.mxu0 0
    %830 = vmatpush1.bf16.msra.mxu0 0
    %831 = vmatprep.subr.bf16.mxu0 0
    %832 = vmatpush1.bf16.msra.mxu0 0
    %833 = vmatprep.subr.bf16.mxu0 0
    %834 = vmatpush1.bf16.msra.mxu0 0
    %835 = vmatprep.subr.bf16.mxu0 0
    %836 = vmatpush1.bf16.msra.mxu0 0
    %837 = vmatprep.subr.bf16.mxu0 0
    %838 = vmatpush1.bf16.msra.mxu0 0
    %839 = vmatprep.subr.bf16.mxu0 0
    %840 = vmatpush1.bf16.msra.mxu0 0
    %841 = vmatprep.mubr.bf16.mxu0 0
    %842 = vmatmul.mubr.bf16.gmra.mrb[0].mxu0 %v259
    %v843 = vpop.f32.mrb[0].mxu0
    %v844 = vadd.f32 %v353, %v843
    %v845 = vpop.f32.mrb[0].mxu0
    %v846 = vadd.f32 %v357, %v845
    %v847 = vpop.f32.mrb[0].mxu0
    %v848 = vpop.f32.mrb[0].mxu0
    %849 = vdwg.mxu0
    %v850 = vmax.f32 %v721, 0.0
    %v851 = vmax.f32 %v723, 0.0
    %v852 = vmax.f32 %v762, 0.0
    %v853 = vmax.f32 %v764, 0.0
    %v854 = vmax.f32 %v803, 0.0
    %v855 = vmax.f32 %v805, 0.0
    %v856 = vmax.f32 %v844, 0.0
    %v857 = vmax.f32 %v846, 0.0
    %v858 = vpack.c.bf16 %v850, %v850
    %v859 = vpack.c.bf16 %v851, %v851
    %v860 = vpack.c.bf16 %v852, %v852
    %v861 = vpack.c.bf16 %v853, %v853
    %v862 = vpack.c.bf16 %v854, %v854
    %v863 = vpack.c.bf16 %v855, %v855
    %v864 = vpack.c.bf16 %v856, %v856
    %v865 = vpack.c.bf16 %v857, %v857
    %v866 = vld [vmem:[#allocation5] sm:$0xf]
    %v867 = vld [vmem:[#allocation5 + $0x4] sm:$0xf]
    %v868 = vld [vmem:[#allocation5 + $0x8] sm:$0xf]
    %v869 = vld [vmem:[#allocation5 + $0xc] sm:$0xf]
    %v870 = vld [vmem:[#allocation5 + $0x10] sm:$0xf]
    %v871 = vld [vmem:[#allocation5 + $0x14] sm:$0xf]
    %v872 = vld [vmem:[#allocation5 + $0x18] sm:$0xf]
    %v873 = vld [vmem:[#allocation5 + $0x1c] sm:$0xf]
    %v874 = vld [vmem:[#allocation5 + $0x20] sm:$0xf]
    %v875 = vld [vmem:[#allocation5 + $0x24] sm:$0xf]
    %v876 = vld [vmem:[#allocation5 + $0x28] sm:$0xf]
    %v877 = vld [vmem:[#allocation5 + $0x2c] sm:$0xf]
    %v878 = vld [vmem:[#allocation5 + $0x30] sm:$0xf]
    %v879 = vld [vmem:[#allocation5 + $0x34] sm:$0xf]
    %v880 = vld [vmem:[#allocation5 + $0x38] sm:$0xf]
    %v881 = vld [vmem:[#allocation5 + $0x3c] sm:$0xf]
    %v882 = vld [vmem:[#allocation5 + $0x40] sm:$0xf]
    %v883 = vld [vmem:[#allocation5 + $0x44] sm:$0xf]
    %v884 = vld [vmem:[#allocation5 + $0x48] sm:$0xf]
    %v885 = vld [vmem:[#allocation5 + $0x4c] sm:$0xf]
    %v886 = vld [vmem:[#allocation5 + $0x50] sm:$0xf]
    %v887 = vld [vmem:[#allocation5 + $0x54] sm:$0xf]
    %v888 = vld [vmem:[#allocation5 + $0x58] sm:$0xf]
    %v889 = vld [vmem:[#allocation5 + $0x5c] sm:$0xf]
    %v890 = vld [vmem:[#allocation5 + $0x60] sm:$0xf]
    %v891 = vld [vmem:[#allocation5 + $0x64] sm:$0xf]
    %v892 = vld [vmem:[#allocation5 + $0x68] sm:$0xf]
    %v893 = vld [vmem:[#allocation5 + $0x6c] sm:$0xf]
    %v894 = vld [vmem:[#allocation5 + $0x70] sm:$0xf]
    %v895 = vld [vmem:[#allocation5 + $0x74] sm:$0xf]
    %v896 = vld [vmem:[#allocation5 + $0x78] sm:$0xf]
    %v897 = vld [vmem:[#allocation5 + $0x7c] sm:$0xf]
    %v898 = vld [vmem:[#allocation5 + $0x80] sm:$0xf]
    %v899 = vld [vmem:[#allocation5 + $0x84] sm:$0xf]
    %v900 = vld [vmem:[#allocation5 + $0x88] sm:$0xf]
    %v901 = vld [vmem:[#allocation5 + $0x8c] sm:$0xf]
    %v902 = vld [vmem:[#allocation5 + $0x90] sm:$0xf]
    %v903 = vld [vmem:[#allocation5 + $0x94] sm:$0xf]
    %v904 = vld [vmem:[#allocation5 + $0x98] sm:$0xf]
    %v905 = vld [vmem:[#allocation5 + $0x9c] sm:$0xf]
    %v906 = vld [vmem:[#allocation5 + $0xa0] sm:$0xf]
    %v907 = vld [vmem:[#allocation5 + $0xa4] sm:$0xf]
    %v908 = vld [vmem:[#allocation5 + $0xa8] sm:$0xf]
    %v909 = vld [vmem:[#allocation5 + $0xac] sm:$0xf]
    %v910 = vld [vmem:[#allocation5 + $0xb0] sm:$0xf]
    %v911 = vld [vmem:[#allocation5 + $0xb4] sm:$0xf]
    %v912 = vld [vmem:[#allocation5 + $0xb8] sm:$0xf]
    %v913 = vld [vmem:[#allocation5 + $0xbc] sm:$0xf]
    %v914 = vld [vmem:[#allocation5 + $0xc0] sm:$0xf]
    %v915 = vld [vmem:[#allocation5 + $0xc4] sm:$0xf]
    %v916 = vld [vmem:[#allocation5 + $0xc8] sm:$0xf]
    %v917 = vld [vmem:[#allocation5 + $0xcc] sm:$0xf]
    %v918 = vld [vmem:[#allocation5 + $0xd0] sm:$0xf]
    %v919 = vld [vmem:[#allocation5 + $0xd4] sm:$0xf]
    %v920 = vld [vmem:[#allocation5 + $0xd8] sm:$0xf]
    %v921 = vld [vmem:[#allocation5 + $0xdc] sm:$0xf]
    %v922 = vld [vmem:[#allocation5 + $0xe0] sm:$0xf]
    %v923 = vld [vmem:[#allocation5 + $0xe4] sm:$0xf]
    %v924 = vld [vmem:[#allocation5 + $0xe8] sm:$0xf]
    %v925 = vld [vmem:[#allocation5 + $0xec] sm:$0xf]
    %v926 = vld [vmem:[#allocation5 + $0xf0] sm:$0xf]
    %v927 = vld [vmem:[#allocation5 + $0xf4] sm:$0xf]
    %v928 = vld [vmem:[#allocation5 + $0xf8] sm:$0xf]
    %v929 = vld [vmem:[#allocation5 + $0xfc] sm:$0xf]
    %v930 = vld [vmem:[#allocation5 + $0x100] sm:$0xf]
    %v931 = vld [vmem:[#allocation5 + $0x104] sm:$0xf]
    %v932 = vld [vmem:[#allocation5 + $0x108] sm:$0xf]
    %v933 = vld [vmem:[#allocation5 + $0x10c] sm:$0xf]
    %v934 = vld [vmem:[#allocation5 + $0x110] sm:$0xf]
    %v935 = vld [vmem:[#allocation5 + $0x114] sm:$0xf]
    %v936 = vld [vmem:[#allocation5 + $0x118] sm:$0xf]
    %v937 = vld [vmem:[#allocation5 + $0x11c] sm:$0xf]
    %v938 = vld [vmem:[#allocation5 + $0x120] sm:$0xf]
    %v939 = vld [vmem:[#allocation5 + $0x124] sm:$0xf]
    %v940 = vld [vmem:[#allocation5 + $0x128] sm:$0xf]
    %v941 = vld [vmem:[#allocation5 + $0x12c] sm:$0xf]
    %v942 = vld [vmem:[#allocation5 + $0x130] sm:$0xf]
    %v943 = vld [vmem:[#allocation5 + $0x134] sm:$0xf]
    %v944 = vld [vmem:[#allocation5 + $0x138] sm:$0xf]
    %v945 = vld [vmem:[#allocation5 + $0x13c] sm:$0xf]
    %v946 = vld [vmem:[#allocation5 + $0x140] sm:$0xf]
    %v947 = vld [vmem:[#allocation5 + $0x144] sm:$0xf]
    %v948 = vld [vmem:[#allocation5 + $0x148] sm:$0xf]
    %v949 = vld [vmem:[#allocation5 + $0x14c] sm:$0xf]
    %v950 = vld [vmem:[#allocation5 + $0x150] sm:$0xf]
    %v951 = vld [vmem:[#allocation5 + $0x154] sm:$0xf]
    %v952 = vld [vmem:[#allocation5 + $0x158] sm:$0xf]
    %v953 = vld [vmem:[#allocation5 + $0x15c] sm:$0xf]
    %v954 = vld [vmem:[#allocation5 + $0x160] sm:$0xf]
    %v955 = vld [vmem:[#allocation5 + $0x164] sm:$0xf]
    %v956 = vld [vmem:[#allocation5 + $0x168] sm:$0xf]
    %v957 = vld [vmem:[#allocation5 + $0x16c] sm:$0xf]
    %v958 = vld [vmem:[#allocation5 + $0x170] sm:$0xf]
    %v959 = vld [vmem:[#allocation5 + $0x174] sm:$0xf]
    %v960 = vld [vmem:[#allocation5 + $0x178] sm:$0xf]
    %v961 = vld [vmem:[#allocation5 + $0x17c] sm:$0xf]
    %v962 = vld [vmem:[#allocation5 + $0x180] sm:$0xf]
    %v963 = vld [vmem:[#allocation5 + $0x184] sm:$0xf]
    %v964 = vld [vmem:[#allocation5 + $0x188] sm:$0xf]
    %v965 = vld [vmem:[#allocation5 + $0x18c] sm:$0xf]
    %v966 = vld [vmem:[#allocation5 + $0x190] sm:$0xf]
    %v967 = vld [vmem:[#allocation5 + $0x194] sm:$0xf]
    %v968 = vld [vmem:[#allocation5 + $0x198] sm:$0xf]
    %v969 = vld [vmem:[#allocation5 + $0x19c] sm:$0xf]
    %v970 = vld [vmem:[#allocation5 + $0x1a0] sm:$0xf]
    %v971 = vld [vmem:[#allocation5 + $0x1a4] sm:$0xf]
    %v972 = vld [vmem:[#allocation5 + $0x1a8] sm:$0xf]
    %v973 = vld [vmem:[#allocation5 + $0x1ac] sm:$0xf]
    %v974 = vld [vmem:[#allocation5 + $0x1b0] sm:$0xf]
    %v975 = vld [vmem:[#allocation5 + $0x1b4] sm:$0xf]
    %v976 = vld [vmem:[#allocation5 + $0x1b8] sm:$0xf]
    %v977 = vld [vmem:[#allocation5 + $0x1bc] sm:$0xf]
    %v978 = vld [vmem:[#allocation5 + $0x1c0] sm:$0xf]
    %v979 = vld [vmem:[#allocation5 + $0x1c4] sm:$0xf]
    %v980 = vld [vmem:[#allocation5 + $0x1c8] sm:$0xf]
    %v981 = vld [vmem:[#allocation5 + $0x1cc] sm:$0xf]
    %v982 = vld [vmem:[#allocation5 + $0x1d0] sm:$0xf]
    %v983 = vld [vmem:[#allocation5 + $0x1d4] sm:$0xf]
    %v984 = vld [vmem:[#allocation5 + $0x1d8] sm:$0xf]
    %v985 = vld [vmem:[#allocation5 + $0x1dc] sm:$0xf]
    %v986 = vld [vmem:[#allocation5 + $0x1e0] sm:$0xf]
    %v987 = vld [vmem:[#allocation5 + $0x1e4] sm:$0xf]
    %v988 = vld [vmem:[#allocation5 + $0x1e8] sm:$0xf]
    %v989 = vld [vmem:[#allocation5 + $0x1ec] sm:$0xf]
    %v990 = vld [vmem:[#allocation5 + $0x1f0] sm:$0xf]
    %v991 = vld [vmem:[#allocation5 + $0x1f4] sm:$0xf]
    %v992 = vld [vmem:[#allocation5 + $0x1f8] sm:$0xf]
    %v993 = vld [vmem:[#allocation5 + $0x1fc] sm:$0xf]
    %v994 = vld [vmem:[%s8] sm:$0x1]
    %v996 = vlaneseq
    %v997 = vshrl.u32 %v996, 7
    %v998 = vsub.s32 0, %v997
    %v999 = vrot.slane %v994, %v998
    %v1129 = vunpack.c.l.b16 %v866
    %v1130 = vunpack.c.l.b16 %v867
    %v1131 = vunpack.c.l.b16 %v868
    %v1132 = vunpack.c.l.b16 %v869
    %v1133 = vunpack.c.l.b16 %v870
    %v1134 = vunpack.c.l.b16 %v871
    %v1135 = vunpack.c.l.b16 %v872
    %v1136 = vunpack.c.l.b16 %v873
    %v1137 = vunpack.c.l.b16 %v874
    %v1138 = vunpack.c.l.b16 %v875
    %v1139 = vunpack.c.l.b16 %v876
    %v1140 = vunpack.c.l.b16 %v877
    %v1141 = vunpack.c.l.b16 %v878
    %v1142 = vunpack.c.l.b16 %v879
    %v1143 = vunpack.c.l.b16 %v880
    %v1144 = vunpack.c.l.b16 %v881
    %v1145 = vunpack.c.l.b16 %v882
    %v1146 = vunpack.c.l.b16 %v883
    %v1147 = vunpack.c.l.b16 %v884
    %v1148 = vunpack.c.l.b16 %v885
    %v1149 = vunpack.c.l.b16 %v886
    %v1150 = vunpack.c.l.b16 %v887
    %v1151 = vunpack.c.l.b16 %v888
    %v1152 = vunpack.c.l.b16 %v889
    %v1153 = vunpack.c.l.b16 %v890
    %v1154 = vunpack.c.l.b16 %v891
    %v1155 = vunpack.c.l.b16 %v892
    %v1156 = vunpack.c.l.b16 %v893
    %v1157 = vunpack.c.l.b16 %v894
    %v1158 = vunpack.c.l.b16 %v895
    %v1159 = vunpack.c.l.b16 %v896
    %v1160 = vunpack.c.l.b16 %v897
    %v1161 = vunpack.c.l.b16 %v898
    %v1162 = vunpack.c.l.b16 %v899
    %v1163 = vunpack.c.l.b16 %v900
    %v1164 = vunpack.c.l.b16 %v901
    %v1165 = vunpack.c.l.b16 %v902
    %v1166 = vunpack.c.l.b16 %v903
    %v1167 = vunpack.c.l.b16 %v904
    %v1168 = vunpack.c.l.b16 %v905
    %v1169 = vunpack.c.l.b16 %v906
    %v1170 = vunpack.c.l.b16 %v907
    %v1171 = vunpack.c.l.b16 %v908
    %v1172 = vunpack.c.l.b16 %v909
    %v1173 = vunpack.c.l.b16 %v910
    %v1174 = vunpack.c.l.b16 %v911
    %v1175 = vunpack.c.l.b16 %v912
    %v1176 = vunpack.c.l.b16 %v913
    %v1177 = vunpack.c.l.b16 %v914
    %v1178 = vunpack.c.l.b16 %v915
    %v1179 = vunpack.c.l.b16 %v916
    %v1180 = vunpack.c.l.b16 %v917
    %v1181 = vunpack.c.l.b16 %v918
    %v1182 = vunpack.c.l.b16 %v919
    %v1183 = vunpack.c.l.b16 %v920
    %v1184 = vunpack.c.l.b16 %v921
    %v1185 = vunpack.c.l.b16 %v922
    %v1186 = vunpack.c.l.b16 %v923
    %v1187 = vunpack.c.l.b16 %v924
    %v1188 = vunpack.c.l.b16 %v925
    %v1189 = vunpack.c.l.b16 %v926
    %v1190 = vunpack.c.l.b16 %v927
    %v1191 = vunpack.c.l.b16 %v928
    %v1192 = vunpack.c.l.b16 %v929
    %v1193 = vunpack.c.l.b16 %v930
    %v1194 = vunpack.c.l.b16 %v931
    %v1195 = vunpack.c.l.b16 %v932
    %v1196 = vunpack.c.l.b16 %v933
    %v1197 = vunpack.c.l.b16 %v934
    %v1198 = vunpack.c.l.b16 %v935
    %v1199 = vunpack.c.l.b16 %v936
    %v1200 = vunpack.c.l.b16 %v937
    %v1201 = vunpack.c.l.b16 %v938
    %v1202 = vunpack.c.l.b16 %v939
    %v1203 = vunpack.c.l.b16 %v940
    %v1204 = vunpack.c.l.b16 %v941
    %v1205 = vunpack.c.l.b16 %v942
    %v1206 = vunpack.c.l.b16 %v943
    %v1207 = vunpack.c.l.b16 %v944
    %v1208 = vunpack.c.l.b16 %v945
    %v1209 = vunpack.c.l.b16 %v946
    %v1210 = vunpack.c.l.b16 %v947
    %v1211 = vunpack.c.l.b16 %v948
    %v1212 = vunpack.c.l.b16 %v949
    %v1213 = vunpack.c.l.b16 %v950
    %v1214 = vunpack.c.l.b16 %v951
    %v1215 = vunpack.c.l.b16 %v952
    %v1216 = vunpack.c.l.b16 %v953
    %v1217 = vunpack.c.l.b16 %v954
    %v1218 = vunpack.c.l.b16 %v955
    %v1219 = vunpack.c.l.b16 %v956
    %v1220 = vunpack.c.l.b16 %v957
    %v1221 = vunpack.c.l.b16 %v958
    %v1222 = vunpack.c.l.b16 %v959
    %v1223 = vunpack.c.l.b16 %v960
    %v1224 = vunpack.c.l.b16 %v961
    %v1225 = vunpack.c.l.b16 %v962
    %v1226 = vunpack.c.l.b16 %v963
    %v1227 = vunpack.c.l.b16 %v964
    %v1228 = vunpack.c.l.b16 %v965
    %v1229 = vunpack.c.l.b16 %v966
    %v1230 = vunpack.c.l.b16 %v967
    %v1231 = vunpack.c.l.b16 %v968
    %v1232 = vunpack.c.l.b16 %v969
    %v1233 = vunpack.c.l.b16 %v970
    %v1234 = vunpack.c.l.b16 %v971
    %v1235 = vunpack.c.l.b16 %v972
    %v1236 = vunpack.c.l.b16 %v973
    %v1237 = vunpack.c.l.b16 %v974
    %v1238 = vunpack.c.l.b16 %v975
    %v1239 = vunpack.c.l.b16 %v976
    %v1240 = vunpack.c.l.b16 %v977
    %v1241 = vunpack.c.l.b16 %v978
    %v1242 = vunpack.c.l.b16 %v979
    %v1243 = vunpack.c.l.b16 %v980
    %v1244 = vunpack.c.l.b16 %v981
    %v1245 = vunpack.c.l.b16 %v982
    %v1246 = vunpack.c.l.b16 %v983
    %v1247 = vunpack.c.l.b16 %v984
    %v1248 = vunpack.c.l.b16 %v985
    %v1249 = vunpack.c.l.b16 %v986
    %v1250 = vunpack.c.l.b16 %v987
    %v1251 = vunpack.c.l.b16 %v988
    %v1252 = vunpack.c.l.b16 %v989
    %v1253 = vunpack.c.l.b16 %v990
    %v1254 = vunpack.c.l.b16 %v991
    %v1255 = vunpack.c.l.b16 %v992
    %v1256 = vunpack.c.l.b16 %v993
    %v1257 = vpack.c.b16 %v1130, %v1129
    %v1258 = vpack.c.b16 %v1132, %v1131
    %v1259 = vpack.c.b16 %v1134, %v1133
    %v1260 = vpack.c.b16 %v1136, %v1135
    %v1261 = vpack.c.b16 %v1138, %v1137
    %v1262 = vpack.c.b16 %v1140, %v1139
    %v1263 = vpack.c.b16 %v1142, %v1141
    %v1264 = vpack.c.b16 %v1144, %v1143
    %v1265 = vpack.c.b16 %v1146, %v1145
    %v1266 = vpack.c.b16 %v1148, %v1147
    %v1267 = vpack.c.b16 %v1150, %v1149
    %v1268 = vpack.c.b16 %v1152, %v1151
    %v1269 = vpack.c.b16 %v1154, %v1153
    %v1270 = vpack.c.b16 %v1156, %v1155
    %v1271 = vpack.c.b16 %v1158, %v1157
    %v1272 = vpack.c.b16 %v1160, %v1159
    %v1273 = vpack.c.b16 %v1162, %v1161
    %v1274 = vpack.c.b16 %v1164, %v1163
    %v1275 = vpack.c.b16 %v1166, %v1165
    %v1276 = vpack.c.b16 %v1168, %v1167
    %v1277 = vpack.c.b16 %v1170, %v1169
    %v1278 = vpack.c.b16 %v1172, %v1171
    %v1279 = vpack.c.b16 %v1174, %v1173
    %v1280 = vpack.c.b16 %v1176, %v1175
    %v1281 = vpack.c.b16 %v1178, %v1177
    %v1282 = vpack.c.b16 %v1180, %v1179
    %v1283 = vpack.c.b16 %v1182, %v1181
    %v1284 = vpack.c.b16 %v1184, %v1183
    %v1285 = vpack.c.b16 %v1186, %v1185
    %v1286 = vpack.c.b16 %v1188, %v1187
    %v1287 = vpack.c.b16 %v1190, %v1189
    %v1288 = vpack.c.b16 %v1192, %v1191
    %v1289 = vpack.c.b16 %v1194, %v1193
    %v1290 = vpack.c.b16 %v1196, %v1195
    %v1291 = vpack.c.b16 %v1198, %v1197
    %v1292 = vpack.c.b16 %v1200, %v1199
    %v1293 = vpack.c.b16 %v1202, %v1201
    %v1294 = vpack.c.b16 %v1204, %v1203
    %v1295 = vpack.c.b16 %v1206, %v1205
    %v1296 = vpack.c.b16 %v1208, %v1207
    %v1297 = vpack.c.b16 %v1210, %v1209
    %v1298 = vpack.c.b16 %v1212, %v1211
    %v1299 = vpack.c.b16 %v1214, %v1213
    %v1300 = vpack.c.b16 %v1216, %v1215
    %v1301 = vpack.c.b16 %v1218, %v1217
    %v1302 = vpack.c.b16 %v1220, %v1219
    %v1303 = vpack.c.b16 %v1222, %v1221
    %v1304 = vpack.c.b16 %v1224, %v1223
    %v1305 = vpack.c.b16 %v1226, %v1225
    %v1306 = vpack.c.b16 %v1228, %v1227
    %v1307 = vpack.c.b16 %v1230, %v1229
    %v1308 = vpack.c.b16 %v1232, %v1231
    %v1309 = vpack.c.b16 %v1234, %v1233
    %v1310 = vpack.c.b16 %v1236, %v1235
    %v1311 = vpack.c.b16 %v1238, %v1237
    %v1312 = vpack.c.b16 %v1240, %v1239
    %v1313 = vpack.c.b16 %v1242, %v1241
    %v1314 = vpack.c.b16 %v1244, %v1243
    %v1315 = vpack.c.b16 %v1246, %v1245
    %v1316 = vpack.c.b16 %v1248, %v1247
    %v1317 = vpack.c.b16 %v1250, %v1249
    %v1318 = vpack.c.b16 %v1252, %v1251
    %v1319 = vpack.c.b16 %v1254, %v1253
    %v1320 = vpack.c.b16 %v1256, %v1255
    %1385 = vmatprep.subr.bf16.mxu0 0
    %1386 = vmatpush1.bf16.msra.mxu0 %v1257
    %1387 = vmatprep.subr.bf16.mxu0 0
    %1388 = vmatpush1.bf16.msra.mxu0 %v1258
    %1389 = vmatprep.subr.bf16.mxu0 0
    %1390 = vmatpush1.bf16.msra.mxu0 %v1259
    %1391 = vmatprep.subr.bf16.mxu0 0
    %1392 = vmatpush1.bf16.msra.mxu0 %v1260
    %1393 = vmatprep.subr.bf16.mxu0 0
    %1394 = vmatpush1.bf16.msra.mxu0 %v1261
    %1395 = vmatprep.subr.bf16.mxu0 0
    %1396 = vmatpush1.bf16.msra.mxu0 %v1262
    %1397 = vmatprep.subr.bf16.mxu0 0
    %1398 = vmatpush1.bf16.msra.mxu0 %v1263
    %1399 = vmatprep.subr.bf16.mxu0 0
    %1400 = vmatpush1.bf16.msra.mxu0 %v1264
    %1401 = vmatprep.subr.bf16.mxu0 0
    %1402 = vmatpush1.bf16.msra.mxu0 %v1265
    %1403 = vmatprep.subr.bf16.mxu0 0
    %1404 = vmatpush1.bf16.msra.mxu0 %v1266
    %1405 = vmatprep.subr.bf16.mxu0 0
    %1406 = vmatpush1.bf16.msra.mxu0 %v1267
    %1407 = vmatprep.subr.bf16.mxu0 0
    %1408 = vmatpush1.bf16.msra.mxu0 %v1268
    %1409 = vmatprep.subr.bf16.mxu0 0
    %1410 = vmatpush1.bf16.msra.mxu0 %v1269
    %1411 = vmatprep.subr.bf16.mxu0 0
    %1412 = vmatpush1.bf16.msra.mxu0 %v1270
    %1413 = vmatprep.subr.bf16.mxu0 0
    %1414 = vmatpush1.bf16.msra.mxu0 %v1271
    %1415 = vmatprep.subr.bf16.mxu0 0
    %1416 = vmatpush1.bf16.msra.mxu0 %v1272
    %1417 = vmatprep.mubr.bf16.mxu0 %v859
    %1418 = vmatmul.mubr.bf16.gmra.mrb[0].mxu0 %v858
    %v1419 = vpop.f32.mrb[0].mxu0
    %v1420 = vadd.f32 %v999, %v1419
    %v1421 = vpop.f32.mrb[0].mxu0
    %v1422 = vpop.f32.mrb[0].mxu0
    %v1423 = vpop.f32.mrb[0].mxu0
    %1424 = vdwg.mxu0
    %1425 = vmatprep.subr.bf16.mxu0 0
    %1426 = vmatpush1.bf16.msra.mxu0 %v1273
    %1427 = vmatprep.subr.bf16.mxu0 0
    %1428 = vmatpush1.bf16.msra.mxu0 %v1274
    %1429 = vmatprep.subr.bf16.mxu0 0
    %1430 = vmatpush1.bf16.msra.mxu0 %v1275
    %1431 = vmatprep.subr.bf16.mxu0 0
    %1432 = vmatpush1.bf16.msra.mxu0 %v1276
    %1433 = vmatprep.subr.bf16.mxu0 0
    %1434 = vmatpush1.bf16.msra.mxu0 %v1277
    %1435 = vmatprep.subr.bf16.mxu0 0
    %1436 = vmatpush1.bf16.msra.mxu0 %v1278
    %1437 = vmatprep.subr.bf16.mxu0 0
    %1438 = vmatpush1.bf16.msra.mxu0 %v1279
    %1439 = vmatprep.subr.bf16.mxu0 0
    %1440 = vmatpush1.bf16.msra.mxu0 %v1280
    %1441 = vmatprep.subr.bf16.mxu0 0
    %1442 = vmatpush1.bf16.msra.mxu0 %v1281
    %1443 = vmatprep.subr.bf16.mxu0 0
    %1444 = vmatpush1.bf16.msra.mxu0 %v1282
    %1445 = vmatprep.subr.bf16.mxu0 0
    %1446 = vmatpush1.bf16.msra.mxu0 %v1283
    %1447 = vmatprep.subr.bf16.mxu0 0
    %1448 = vmatpush1.bf16.msra.mxu0 %v1284
    %1449 = vmatprep.subr.bf16.mxu0 0
    %1450 = vmatpush1.bf16.msra.mxu0 %v1285
    %1451 = vmatprep.subr.bf16.mxu0 0
    %1452 = vmatpush1.bf16.msra.mxu0 %v1286
    %1453 = vmatprep.subr.bf16.mxu0 0
    %1454 = vmatpush1.bf16.msra.mxu0 %v1287
    %1455 = vmatprep.subr.bf16.mxu0 0
    %1456 = vmatpush1.bf16.msra.mxu0 %v1288
    %1457 = vmatprep.mubr.bf16.mxu0 %v861
    %1458 = vmatmul.mubr.bf16.gmra.mrb[0].mxu0 %v860
    %v1459 = vpop.f32.mrb[0].mxu0
    %v1460 = vadd.f32 %v1420, %v1459
    %v1461 = vpop.f32.mrb[0].mxu0
    %v1462 = vpop.f32.mrb[0].mxu0
    %v1463 = vpop.f32.mrb[0].mxu0
    %1464 = vdwg.mxu0
    %1465 = vmatprep.subr.bf16.mxu0 0
    %1466 = vmatpush1.bf16.msra.mxu0 %v1289
    %1467 = vmatprep.subr.bf16.mxu0 0
    %1468 = vmatpush1.bf16.msra.mxu0 %v1290
    %1469 = vmatprep.subr.bf16.mxu0 0
    %1470 = vmatpush1.bf16.msra.mxu0 %v1291
    %1471 = vmatprep.subr.bf16.mxu0 0
    %1472 = vmatpush1.bf16.msra.mxu0 %v1292
    %1473 = vmatprep.subr.bf16.mxu0 0
    %1474 = vmatpush1.bf16.msra.mxu0 %v1293
    %1475 = vmatprep.subr.bf16.mxu0 0
    %1476 = vmatpush1.bf16.msra.mxu0 %v1294
    %1477 = vmatprep.subr.bf16.mxu0 0
    %1478 = vmatpush1.bf16.msra.mxu0 %v1295
    %1479 = vmatprep.subr.bf16.mxu0 0
    %1480 = vmatpush1.bf16.msra.mxu0 %v1296
    %1481 = vmatprep.subr.bf16.mxu0 0
    %1482 = vmatpush1.bf16.msra.mxu0 %v1297
    %1483 = vmatprep.subr.bf16.mxu0 0
    %1484 = vmatpush1.bf16.msra.mxu0 %v1298
    %1485 = vmatprep.subr.bf16.mxu0 0
    %1486 = vmatpush1.bf16.msra.mxu0 %v1299
    %1487 = vmatprep.subr.bf16.mxu0 0
    %1488 = vmatpush1.bf16.msra.mxu0 %v1300
    %1489 = vmatprep.subr.bf16.mxu0 0
    %1490 = vmatpush1.bf16.msra.mxu0 %v1301
    %1491 = vmatprep.subr.bf16.mxu0 0
    %1492 = vmatpush1.bf16.msra.mxu0 %v1302
    %1493 = vmatprep.subr.bf16.mxu0 0
    %1494 = vmatpush1.bf16.msra.mxu0 %v1303
    %1495 = vmatprep.subr.bf16.mxu0 0
    %1496 = vmatpush1.bf16.msra.mxu0 %v1304
    %1497 = vmatprep.mubr.bf16.mxu0 %v863
    %1498 = vmatmul.mubr.bf16.gmra.mrb[0].mxu0 %v862
    %v1499 = vpop.f32.mrb[0].mxu0
    %v1500 = vadd.f32 %v1460, %v1499
    %v1501 = vpop.f32.mrb[0].mxu0
    %v1502 = vpop.f32.mrb[0].mxu0
    %v1503 = vpop.f32.mrb[0].mxu0
    %1504 = vdwg.mxu0
    %1505 = vmatprep.subr.bf16.mxu0 0
    %1506 = vmatpush1.bf16.msra.mxu0 %v1305
    %1507 = vmatprep.subr.bf16.mxu0 0
    %1508 = vmatpush1.bf16.msra.mxu0 %v1306
    %1509 = vmatprep.subr.bf16.mxu0 0
    %1510 = vmatpush1.bf16.msra.mxu0 %v1307
    %1511 = vmatprep.subr.bf16.mxu0 0
    %1512 = vmatpush1.bf16.msra.mxu0 %v1308
    %1513 = vmatprep.subr.bf16.mxu0 0
    %1514 = vmatpush1.bf16.msra.mxu0 %v1309
    %1515 = vmatprep.subr.bf16.mxu0 0
    %1516 = vmatpush1.bf16.msra.mxu0 %v1310
    %1517 = vmatprep.subr.bf16.mxu0 0
    %1518 = vmatpush1.bf16.msra.mxu0 %v1311
    %1519 = vmatprep.subr.bf16.mxu0 0
    %1520 = vmatpush1.bf16.msra.mxu0 %v1312
    %1521 = vmatprep.subr.bf16.mxu0 0
    %1522 = vmatpush1.bf16.msra.mxu0 %v1313
    %1523 = vmatprep.subr.bf16.mxu0 0
    %1524 = vmatpush1.bf16.msra.mxu0 %v1314
    %1525 = vmatprep.subr.bf16.mxu0 0
    %1526 = vmatpush1.bf16.msra.mxu0 %v1315
    %1527 = vmatprep.subr.bf16.mxu0 0
    %1528 = vmatpush1.bf16.msra.mxu0 %v1316
    %1529 = vmatprep.subr.bf16.mxu0 0
    %1530 = vmatpush1.bf16.msra.mxu0 %v1317
    %1531 = vmatprep.subr.bf16.mxu0 0
    %1532 = vmatpush1.bf16.msra.mxu0 %v1318
    %1533 = vmatprep.subr.bf16.mxu0 0
    %1534 = vmatpush1.bf16.msra.mxu0 %v1319
    %1535 = vmatprep.subr.bf16.mxu0 0
    %1536 = vmatpush1.bf16.msra.mxu0 %v1320
    %1537 = vmatprep.mubr.bf16.mxu0 %v865
    %1538 = vmatmul.mubr.bf16.gmra.mrb[0].mxu0 %v864
    %v1539 = vpop.f32.mrb[0].mxu0
    %v1540 = vadd.f32 %v1500, %v1539
    %v1541 = vpop.f32.mrb[0].mxu0
    %v1542 = vpop.f32.mrb[0].mxu0
    %v1543 = vpop.f32.mrb[0].mxu0
    %1544 = vdwg.mxu0
    %1545 = vst [vmem:[#allocation7] sm:$0xff] %v1540
    // Predicated region
    $region46: #{tpu_custom_call.1} parent=1 // pred_check
      _
    $region47: #{tpu_custom_call.1} parent=1 // pred_check_branch
      %1547 = sbr.rel (0) target = $region49
    $region48: #{tpu_custom_call.1} parent=1 // pred_region
      %s1549 = ssub.s32 128, 128
      %1550 = vsyncadd [#allocation4], %s1549
      %s1552 = sshll.u32 [#allocation7], 4
      %s1553 = int_to_ptr.vmem [resolvable:$true] %s1552
      %1555 = dma.vmem_to_hbm [thread:$0]  %s1553, 128, %s9, [#allocation4]
    $region49: #{tpu_custom_call.1} parent=1 // pred_fallthru
      _
    // Predicated region
    $region50: #{tpu_custom_call.1} parent=1 // pred_check
      _
    $region51: #{tpu_custom_call.1} parent=1 // pred_check_branch
      %1557 = sbr.rel (0) target = $region53
    $region52: #{tpu_custom_call.1} parent=1 // pred_region
      %1558 = dma.done [#allocation4], 128
    $region53: #{tpu_custom_call.1} parent=1 // pred_fallthru
      _
    %1559 = vsyncpa [#allocation3], 1
    %1560 = vsyncpa [#allocation6], 1
    %1561 = vsyncpa [#allocation4], 1

</llo_original>
